<compile_context>
chip_gen: v6e
topology: v6e:2x2x1
jax: 0.10.0
libtpu: 0.0.40
codegen_flags: <defaults>
</compile_context>

<pallas_src>
from functools import partial

import jax
import jax.numpy as jnp
from jax.experimental import pallas as pl
from jax.experimental.pallas import tpu as pltpu


def _round_up(x, m):
    return ((x + m - 1) // m) * m


def _vmem_capacity_bytes():
    """Physical VMEM per core; conservative 64 MiB fallback (v7x)."""
    try:
        return max(int(pltpu.get_tpu_info().vmem_capacity_bytes), 16 * 1024 * 1024)
    except Exception:
        return 64 * 1024 * 1024


def _per_row_vmem_bytes(C, itemsize):
    """Estimated VMEM bytes needed per batch row of a tile.

    Double-buffered logits block (lane-padded to 128) + ~3 f32 full-tile
    temporaries (upcast / exp / one-hot select) + lane-padded targets and
    per-sample output blocks (double-buffered).
    """
    lane_c = _round_up(C, 128)
    return 2 * lane_c * itemsize + 3 * lane_c * 4 + 2 * 128 * 4 + 2 * 128 * 4


def _focal_loss_kernel(logits_ref, tgt_ref, out_ref, *, gamma, n_valid, tile_n,
                       mask_rows):
    x = logits_ref[...]                              # (tile_n, C) native dtype
    t = tgt_ref[...]                                 # (tile_n, 1) int32

    # Gather the target-class logit with an iota one-hot (no dynamic gather).
    # The select runs on the native-dtype block; exactly one non-zero per row,
    # so the f32 reduce is exact.
    cols = jax.lax.broadcasted_iota(jnp.int32, x.shape, 1)
    tgt_logit = jnp.sum(
        jnp.where(cols == t, x, jnp.zeros_like(x)).astype(jnp.float32),
        axis=-1, keepdims=True)

    # Numerically-stable log-sum-exp; exp computed in a single f32 pass.
    xf = x.astype(jnp.float32)
    m = jnp.max(xf, axis=-1, keepdims=True)
    e = jnp.exp(xf - m)
    lse = jnp.log(jnp.sum(e, axis=-1, keepdims=True)) + m

    # Per-sample NLL; clamp at 0 so exp(-logp) <= 1 (protects the fractional-
    # gamma pow path from NaNs caused by rounding).
    logp = jnp.maximum(lse - tgt_logit, 0.0)

    # Focal weighting, specialized on the static gamma.
    if gamma == 0.0:
        loss = logp                                  # plain CE: skip exp/pow
    elif float(gamma).is_integer() and gamma > 0:
        w = 1.0 - jnp.exp(-logp)
        fw = w
        for _ in range(int(gamma) - 1):              # integer power via multiplies
            fw = fw * w
        loss = fw * logp
    else:
        base = jnp.maximum(1.0 - jnp.exp(-logp), 0.0)
        loss = base ** gamma * logp

    if mask_rows:
        # Ragged edge block: zero rows past the true batch.  (Stores past N
        # are dropped by Pallas anyway; this keeps the math NaN-free and
        # robust.)  Keep this mask AFTER the target-select/where above.
        i = pl.program_id(0)
        rows = i * tile_n + jax.lax.broadcasted_iota(jnp.int32, loss.shape, 0)
        loss = jnp.where(rows < n_valid, loss, 0.0)

    out_ref[...] = loss.astype(out_ref.dtype)


def focal_loss(logits, targets, *, gamma=0.0, eps=1e-7, tile_n=None):
    """Pallas TPU focal loss. logits: [N, C] (f32 or bf16), targets: [N] int."""
    del eps  # unused in the PyTorch forward as well
    N, C = logits.shape
    itemsize = jnp.dtype(logits.dtype).itemsize

    # ---- generation-aware tile / VMEM sizing --------------------------------
    vmem_cap = _vmem_capacity_bytes()
    budget = (vmem_cap * 3) // 4                  # ~48 MiB on v7x, ~96 MiB v5e/v6e
    headroom = 2 * 1024 * 1024
    per_row = _per_row_vmem_bytes(C, itemsize)

    if tile_n is None:
        tile_n = max(16, min((budget - headroom) // per_row, 2048))
        # Keep >= ~4 grid steps for batches that allow it (v7x megacore).
        if N >= 64:
            tile_n = min(tile_n, pl.cdiv(N, 4))
    tile_n = int(min(max(int(tile_n), 16), _round_up(N, 16)))
    tile_n = max(16, (tile_n // 16) * 16)         # sublane packing (incl. bf16)
    if pl.cdiv(N, tile_n) == 1:
        tile_n = N                                # single block == full array dims
    num_tiles = pl.cdiv(N, tile_n)
    mask_rows = (N % tile_n) != 0

    vmem_limit = int(min(max(per_row * tile_n + headroom, 32 * 1024 * 1024), budget))

    # ---- kernel launch -------------------------------------------------------
    tgt2d = targets.astype(jnp.int32).reshape(N, 1)

    kernel = partial(
        _focal_loss_kernel,
        gamma=float(gamma),
        n_valid=int(N),
        tile_n=int(tile_n),
        mask_rows=bool(mask_rows),
    )

    per_sample = pl.pallas_call(
        kernel,
        out_shape=jax.ShapeDtypeStruct((N, 1), jnp.float32),
        grid_spec=pltpu.PrefetchScalarGridSpec(
            num_scalar_prefetch=0,
            grid=(num_tiles,),
            in_specs=[
                pl.BlockSpec((tile_n, C), lambda i: (i, 0)),   # logits tile
                pl.BlockSpec((tile_n, 1), lambda i: (i, 0)),   # targets tile
            ],
            out_specs=pl.BlockSpec((tile_n, 1), lambda i: (i, 0)),
        ),
        compiler_params=pltpu.CompilerParams(
            dimension_semantics=("parallel",),   # no carried state -> megacore OK
            vmem_limit_bytes=vmem_limit,
        ),
    )(logits, tgt2d)

    # Mean over the true batch (output has exactly N rows; ragged-block rows
    # past N are never written back).
    return jnp.sum(per_sample) / N


def _focal_loss_ref(logits, targets, gamma):
    # pure-JAX reference (mirrors F.cross_entropy(reduction='none') + focal)
    logp = -jax.nn.log_softmax(logits.astype(jnp.float32), axis=-1)
    logp = jnp.take_along_axis(logp, targets[:, None].astype(jnp.int32), axis=-1)[:, 0]
    p = jnp.exp(-logp)
    return jnp.mean((1.0 - p) ** gamma * logp)


if __name__ == "__main__":
    key = jax.random.PRNGKey(0)
    k1, k2 = jax.random.split(key)

    # batch not a multiple of 16 -> single full-array block (no padding)
    N, C = 19, 32
    logits = jax.random.normal(k1, (N, C), dtype=jnp.float32)
    targets = jax.random.randint(k2, (N,), 0, C, dtype=jnp.int32)

    # gamma = 0 (module default / plain CE), integer gamma (multiply path),
    # fractional gamma (general pow path)
    for gamma in (0.0, 2.0, 0.5):
        out = jax.block_until_ready(focal_loss(logits, targets, gamma=gamma))
        ref = _focal_loss_ref(logits, targets, gamma)
        assert jnp.allclose(out, ref, rtol=1e-5, atol=1e-6), (gamma, out, ref)

    # multi-tile "parallel" grid with a ragged last block (40 % 16 = 8)
    N2 = 40
    logits2 = jax.random.normal(k1, (N2, C), dtype=jnp.float32)
    targets2 = jax.random.randint(k2, (N2,), 0, C, dtype=jnp.int32)
    out2 = jax.block_until_ready(focal_loss(logits2, targets2, gamma=2.0, tile_n=16))
    ref2 = _focal_loss_ref(logits2, targets2, 2.0)
    assert jnp.allclose(out2, ref2, rtol=1e-5, atol=1e-6), (out2, ref2)

    # auto-tiled multi-step grid (exercises the >=4-step megacore path + mask)
    N3 = 300
    logits3 = jax.random.normal(k1, (N3, C), dtype=jnp.float32)
    targets3 = jax.random.randint(k2, (N3,), 0, C, dtype=jnp.int32)
    out3 = jax.block_until_ready(focal_loss(logits3, targets3, gamma=2.0))
    ref3 = _focal_loss_ref(logits3, targets3, 2.0)
    assert jnp.allclose(out3, ref3, rtol=1e-5, atol=1e-6), (out3, ref3)

    # bf16 ingest path: no wrapper f32 cast, kernel upcasts internally
    out_bf16 = jax.block_until_ready(
        focal_loss(logits.astype(jnp.bfloat16), targets, gamma=2.0))
    ref_bf16 = _focal_loss_ref(
        logits.astype(jnp.bfloat16).astype(jnp.float32), targets, 2.0)
    assert jnp.allclose(out_bf16, ref_bf16, rtol=2e-2, atol=2e-3), (out_bf16, ref_bf16)

    print("KERNEL_OK")
</pallas_src>

<mosaic_0001>
module attributes {stable_mosaic.version = 11 : i64} {
  func.func @_focal_loss_kernel(%arg0: i32, %arg1: memref<19x32xf32, #tpu.memory_space<vmem>>, %arg2: memref<19x1xi32, #tpu.memory_space<vmem>>, %arg3: memref<19x1xf32, #tpu.memory_space<vmem>>) attributes {dimension_semantics = [#tpu.dimension_semantics<parallel>], iteration_bounds = array<i64: 1>, scalar_prefetch = 0 : i64, scratch_operands = 0 : i64, tpu.core_type = #tpu.core_type<tc>, window_params = [{transform_indices = @transform_0, window_bounds = array<i64: 19, 32>}, {transform_indices = @transform_1, window_bounds = array<i64: 19, 1>}, {transform_indices = @transform_2, window_bounds = array<i64: 19, 1>}]} {
    %c0 = arith.constant 0 : index
    %c0_0 = arith.constant 0 : index
    %0 = vector.load %arg1[%c0, %c0_0] : memref<19x32xf32, #tpu.memory_space<vmem>>, vector<19x32xf32>
    %c0_1 = arith.constant 0 : index
    %c0_2 = arith.constant 0 : index
    %1 = vector.load %arg2[%c0_1, %c0_2] : memref<19x1xi32, #tpu.memory_space<vmem>>, vector<19x1xi32>
    %2 = tpu.iota {dimensions = array<i32: 1>} : vector<19x32xi32>
    %3 = vector.broadcast %1 : vector<19x1xi32> to vector<19x32xi32>
    %4 = arith.cmpi eq, %2, %3 : vector<19x32xi32>
    %cst = arith.constant 0.000000e+00 : f32
    %5 = vector.broadcast %cst : f32 to vector<19x32xf32>
    %6 = arith.select %4, %0, %5 : vector<19x32xi1>, vector<19x32xf32>
    %cst_3 = arith.constant dense<0.000000e+00> : vector<19xf32>
    %7 = vector.multi_reduction <add>, %6, %cst_3 [1] : vector<19x32xf32> to vector<19xf32>
    %8 = vector.shape_cast %7 : vector<19xf32> to vector<19x1xf32>
    %cst_4 = arith.constant dense<0xFF800000> : vector<19xf32>
    %9 = vector.multi_reduction <maximumf>, %0, %cst_4 [1] : vector<19x32xf32> to vector<19xf32>
    %10 = vector.shape_cast %9 : vector<19xf32> to vector<19x1xf32>
    %11 = vector.broadcast %10 : vector<19x1xf32> to vector<19x32xf32>
    %12 = arith.subf %0, %11 : vector<19x32xf32>
    %13 = math.exp %12 : vector<19x32xf32>
    %cst_5 = arith.constant dense<0.000000e+00> : vector<19xf32>
    %14 = vector.multi_reduction <add>, %13, %cst_5 [1] : vector<19x32xf32> to vector<19xf32>
    %15 = vector.shape_cast %14 : vector<19xf32> to vector<19x1xf32>
    %16 = math.log %15 : vector<19x1xf32>
    %17 = arith.addf %16, %10 : vector<19x1xf32>
    %18 = arith.subf %17, %8 : vector<19x1xf32>
    %cst_6 = arith.constant 0.000000e+00 : f32
    %19 = vector.broadcast %cst_6 : f32 to vector<19x1xf32>
    %20 = arith.maximumf %18, %19 : vector<19x1xf32>
    %c0_7 = arith.constant 0 : index
    %c0_8 = arith.constant 0 : index
    %21 = vector.load %arg3[%c0_7, %c0_8] : memref<19x1xf32, #tpu.memory_space<vmem>>, vector<19x1xf32>
    tpu.vector_store %arg3[%c0_7, %c0_8], %20 {strides = array<i32>} : memref<19x1xf32, #tpu.memory_space<vmem>>, vector<19x1xf32>,
    return
  }
  func.func @transform_0(%arg0: i32) -> (i32, i32) {
    %c0_i32 = arith.constant 0 : i32
    %c0_i32_0 = arith.constant 0 : i32
    return %arg0, %c0_i32 : i32, i32
  }
  func.func @transform_1(%arg0: i32) -> (i32, i32) {
    %c0_i32 = arith.constant 0 : i32
    %c0_i32_0 = arith.constant 0 : i32
    return %arg0, %c0_i32 : i32, i32
  }
  func.func @transform_2(%arg0: i32) -> (i32, i32) {
    %c0_i32 = arith.constant 0 : i32
    %c0_i32_0 = arith.constant 0 : i32
    return %arg0, %c0_i32 : i32, i32
  }
}

</mosaic_0001>

<llo_original>
// kernel: tpu_custom_call.1
$region0: #{tpu_custom_call.1}
  #allocation0 [shape = 'u32[]', space=smem, size = 0x4, offset = 0x4, fixed_abs, tag = 'smem constant byte address 0x4 - core index']
  #allocation1 [shape = 'u32[144,128]{1,0:T(1,128)}', space=vmem, size = 0x12000, scoped, tag = 'internal scratch']
  %s0 = inlined_call_operand.vmem [shape: f32[19,32], index: 0, kind: input, shape index: {}]
  %s1 = inlined_call_operand.vmem [shape: s32[19,1], index: 1, kind: input, shape index: {}]
  %s2 = inlined_call_operand.vmem [shape: f32[19,1], index: 2, kind: output, shape index: {}]
  %s3 = sld [smem:[#allocation0]]
  $region18: #{tpu_custom_call.1} parent=0
    _
  %s5 = ssub.s32 1, %s3
  %s6 = scalar_select 0, %s5, %s3
  // Predicated region
  $region2: #{tpu_custom_call.1} parent=0 // pred_check
    _
  $region3: #{tpu_custom_call.1} parent=0 // pred_check_branch
    %8 = sbr.rel (0) target = $region5
  $region4: #{tpu_custom_call.1} parent=0 // pred_region
    _
  $region5: #{tpu_custom_call.1} parent=0 // pred_fallthru
    _
  // Predicated region
  $region6: #{tpu_custom_call.1} parent=0 // pred_check
    _
  $region7: #{tpu_custom_call.1} parent=0 // pred_check_branch
    %10 = sbr.rel (0) target = $region9
  $region8: #{tpu_custom_call.1} parent=0 // pred_region
    _
  $region9: #{tpu_custom_call.1} parent=0 // pred_fallthru
    _
  %v11 = vld [vmem:[%s0] sm:$0xff]
  %v12 = vld [vmem:[%s0 + $0x8] sm:$0xff]
  %v13 = vld [vmem:[%s0 + $0x10] sm:$0x7]
  %v14 = vld [vmem:[%s1] sm:$0xff]
  %v15 = vld [vmem:[%s1 + $0x8] sm:$0xff]
  %v16 = vld [vmem:[%s1 + $0x10] sm:$0x7]
  %v17 = vlaneseq
  %v18 = vand.u32 %v17, 127
  %19 = vset.pattern.permute.xlu0 0
  %20 = vperm.xlu0 %19, %v14
  %v21 = vpop.permute.xlu0 %20
  %22 = vset.pattern.permute.xlu0 0
  %23 = vperm.xlu0 %22, %v15
  %v24 = vpop.permute.xlu0 %23
  %25 = vset.pattern.permute.xlu0 0
  %26 = vperm.xlu0 %25, %v16
  %v27 = vpop.permute.xlu0 %26
  %vm28 = vcmp.eq.s32.totalorder %v18, %v21
  %vm29 = vcmp.eq.s32.totalorder %v18, %v24
  %vm30 = vcmp.eq.s32.totalorder %v18, %v27
  %v31 = vsel %vm28, %v11, 0.0
  %v32 = vsel %vm29, %v12, 0.0
  %v33 = vsel %vm30, %v13, 0.0
  %vm34 = vcmask 261120
  %v35 = vsel %vm34, %v31, 0.0
  %36 = vadd.xlane.f32.xlu0 %v35
  %v37 = vpop.xlane.xlu0 %36
  %v38 = vsel %vm34, %v32, 0.0
  %39 = vadd.xlane.f32.xlu0 %v38
  %v40 = vpop.xlane.xlu0 %39
  %vm41 = vcmask 256000
  %v42 = vsel %vm41, %v33, 0.0
  %43 = vadd.xlane.f32.xlu0 %v42
  %v44 = vpop.xlane.xlu0 %43
  %v45 = vsel %vm34, %v11, -inf
  %46 = vmax.xlane.f32.xlu0 %v45
  %v47 = vpop.xlane.xlu0 %46
  %v48 = vsel %vm34, %v12, -inf
  %49 = vmax.xlane.f32.xlu0 %v48
  %v50 = vpop.xlane.xlu0 %49
  %v51 = vsel %vm41, %v13, -inf
  %52 = vmax.xlane.f32.xlu0 %v51
  %v53 = vpop.xlane.xlu0 %52
  %v54 = vsub.f32 %v11, %v47
  %v55 = vsub.f32 %v12, %v50
  %v56 = vsub.f32 %v13, %v53
  %v57 = vmul.f32 %v54, 1.442695
  %v58 = vpow.pop %v57
  %v59 = vmul.f32 %v55, 1.442695
  %v60 = vpow.pop %v59
  %v61 = vmul.f32 %v56, 1.442695
  %v62 = vpow.pop %v61
  %v63 = vsel %vm34, %v58, 0.0
  %64 = vadd.xlane.f32.xlu0 %v63
  %v65 = vpop.xlane.xlu0 %64
  %v66 = vsel %vm34, %v60, 0.0
  %67 = vadd.xlane.f32.xlu0 %v66
  %v68 = vpop.xlane.xlu0 %67
  %v69 = vsel %vm41, %v62, 0.0
  %70 = vadd.xlane.f32.xlu0 %v69
  %v71 = vpop.xlane.xlu0 %70
  %v72 = vlog2.pop %v65
  %v73 = vmul.f32 %v72, 0.6931472
  %v74 = vlog2.pop %v68
  %v75 = vmul.f32 %v74, 0.6931472
  %v76 = vlog2.pop %v71
  %v77 = vmul.f32 %v76, 0.6931472
  %v78 = vadd.f32 %v73, %v47
  %v79 = vadd.f32 %v75, %v50
  %v80 = vadd.f32 %v77, %v53
  %v81 = vsub.f32 %v78, %v37
  %v82 = vsub.f32 %v79, %v40
  %v83 = vsub.f32 %v80, %v44
  %v84 = vmax.f32 %v81, 0.0
  %v85 = vmax.f32 %v82, 0.0
  %v86 = vmax.f32 %v83, 0.0
  %vm87 = vcmask 7168
  %88 = vst.msk [vmem:[%s2] sm:$0xff] %vm87, %v84
  %89 = vst.msk [vmem:[%s2 + $0x8] sm:$0xff] %vm87, %v85
  %vm90 = vcmask 2048
  %91 = vst.msk [vmem:[%s2 + $0x10] sm:$0x7] %vm90, %v86
  // Predicated region
  $region10: #{tpu_custom_call.1} parent=0 // pred_check
    _
  $region11: #{tpu_custom_call.1} parent=0 // pred_check_branch
    %93 = sbr.rel (0) target = $region13
  $region12: #{tpu_custom_call.1} parent=0 // pred_region
    _
  $region13: #{tpu_custom_call.1} parent=0 // pred_fallthru
    _
  // Predicated region
  $region14: #{tpu_custom_call.1} parent=0 // pred_check
    _
  $region15: #{tpu_custom_call.1} parent=0 // pred_check_branch
    %95 = sbr.rel (0) target = $region17
  $region16: #{tpu_custom_call.1} parent=0 // pred_region
    _
  $region17: #{tpu_custom_call.1} parent=0 // pred_fallthru
    _

</llo_original>
